<compile_context>
chip_gen: v5e
topology: v5e:2x2
jax: 0.10.0
libtpu: 0.0.40
codegen_flags: <defaults>
</compile_context>

<pallas_src>
import math

import jax
import jax.numpy as jnp
from jax.experimental import pallas as pl
from jax.experimental.pallas import tpu as pltpu

# ------------------------- model dimensions (small) -------------------------
B = 2        # batch
S = 8        # sequence length
H = 32       # hidden size
V = 64       # vocab size (token embedding rows)
P = 64       # positional-embedding rows (indexed by input_ids, per the module)
BS = B * S   # batch folded into sublanes
LANES = 128  # lane-dense width for weights / output


# ------------------------------ Pallas kernel --------------------------------
def _bart_encoder_kernel(ids_ref, bias_ref, e_ref, wqkv_ref, wo_ref, out_ref):
    # ids_ref  : (BS, 1)       int32   flattened (b*S + s) token ids
    # bias_ref : (BS, BS)      f32     0 for valid same-batch keys, -1e9 otherwise
    # e_ref    : (V, 128)      f32     embed_tokens + embed_positions, zero-padded
    # wqkv_ref : (128, 128)    f32     rows[:H] = [Wq | Wk | Wv | 0], rest zero
    # wo_ref   : (H, 128)      f32     [Wo | 0]
    # out_ref  : (BS, 128)     f32     cols[:H] = encoder states, rest zero
    ids = ids_ref[...]                                          # (BS, 1)

    # Embedding gather as a one-hot matmul (MXU-friendly), fused tables.
    iota_v = jax.lax.broadcasted_iota(jnp.int32, (BS, V), 1)
    onehot = (iota_v == ids).astype(jnp.float32)                # (BS, V)
    x = jnp.dot(onehot, e_ref[...],
                preferred_element_type=jnp.float32)             # (BS, 128)

    # Fused QKV projection: one lane-dense matmul, then static lane slices.
    qkv = jnp.dot(x, wqkv_ref[...],
                  preferred_element_type=jnp.float32)           # (BS, 128)
    q = qkv[:, 0:H]
    k = qkv[:, H:2 * H]
    v = qkv[:, 2 * H:3 * H]

    # Scores without materializing k.T: contract the last dims directly.
    scores = jax.lax.dot_general(
        q, k, (((1,), (1,)), ((), ())),
        preferred_element_type=jnp.float32)                     # (BS, BS)
    scores = scores * jnp.float32(1.0 / math.sqrt(H)) + bias_ref[...]

    # Softmax over keys (cross-batch + padded keys already at -1e9 -> weight 0).
    m = jnp.max(scores, axis=-1, keepdims=True)
    p = jnp.exp(scores - m)
    inv = pl.reciprocal(jnp.sum(p, axis=-1, keepdims=True), approx=True)
    attn = p * inv                                              # (BS, BS)

    ctx = jnp.dot(attn, v, preferred_element_type=jnp.float32)  # (BS, H)
    out = jnp.dot(ctx, wo_ref[...],
                  preferred_element_type=jnp.float32) + x       # (BS, 128)
    out_ref[...] = out                                          # unmasked vst


# ------------------------------ host wrapper ---------------------------------
def bart_encoder_wrapper(input_ids, attention_mask, params):
    """Mirrors _BartEncoderWrapper.forward -> (encoder_states, [], [])."""
    ids = input_ids.astype(jnp.int32).reshape(BS, 1)

    # Combined additive attention bias: block-diagonal over batches AND the
    # key-padding mask, precomputed once on the host side.
    mask = attention_mask.astype(jnp.float32).reshape(BS)           # (BS,)
    batch_of = jnp.repeat(jnp.arange(B, dtype=jnp.int32), S)        # (BS,)
    same_batch = batch_of[:, None] == batch_of[None, :]             # (BS, BS)
    valid = jnp.logical_and(same_batch, mask[None, :] > 0.0)
    bias = jnp.where(valid, 0.0, -1e9).astype(jnp.float32)          # (BS, BS)

    # Fused + lane-padded parameters (layout plumbing, done outside the kernel).
    e = params["embed_tokens"] + params["embed_positions"]          # (V, H)
    e_pad = jnp.zeros((V, LANES), jnp.float32).at[:, :H].set(e)

    wqkv = jnp.concatenate(
        [params["wq"], params["wk"], params["wv"],
         jnp.zeros((H, LANES - 3 * H), jnp.float32)], axis=1)       # (H, 128)
    wqkv_pad = jnp.zeros((LANES, LANES), jnp.float32).at[:H, :].set(wqkv)

    wo_pad = jnp.zeros((H, LANES), jnp.float32).at[:, :H].set(params["wo"])

    out_pad = pl.pallas_call(
        _bart_encoder_kernel,
        out_shape=jax.ShapeDtypeStruct((BS, LANES), jnp.float32),
        grid_spec=pltpu.PrefetchScalarGridSpec(
            num_scalar_prefetch=0,
            grid=(1,),  # single invocation: whole problem fits in VMEM
            in_specs=[
                pl.BlockSpec((BS, 1), lambda i: (0, 0)),        # input_ids
                pl.BlockSpec((BS, BS), lambda i: (0, 0)),       # mask bias
                pl.BlockSpec((V, LANES), lambda i: (0, 0)),     # fused embedding
                pl.BlockSpec((LANES, LANES), lambda i: (0, 0)), # fused Wqkv
                pl.BlockSpec((H, LANES), lambda i: (0, 0)),     # Wo (padded)
            ],
            out_specs=pl.BlockSpec((BS, LANES), lambda i: (0, 0)),
        ),
        compiler_params=pltpu.CompilerParams(
            dimension_semantics=("arbitrary",)),
    )(ids, bias, e_pad, wqkv_pad, wo_pad)

    encoder_states = out_pad[:, :H].reshape(B, S, H)
    # Matches the PyTorch return signature: (encoder_states, [], [])
    return (encoder_states, [], [])


# ---------------------------- pure-JAX reference ------------------------------
def _reference(input_ids, mask, params):
    tok, pos = params["embed_tokens"], params["embed_positions"]
    x = tok[input_ids] + pos[input_ids]                       # (B, S, H)
    q = x @ params["wq"]
    k = x @ params["wk"]
    v = x @ params["wv"]
    scores = jnp.einsum("bqh,bkh->bqk", q, k) / math.sqrt(H)
    scores = jnp.where(mask[:, None, :] > 0, scores, -1e9)
    attn = jax.nn.softmax(scores, axis=-1)
    ctx = jnp.einsum("bqk,bkh->bqh", attn, v)
    return ctx @ params["wo"] + x


# ----------------------------------- main -------------------------------------
if __name__ == "__main__":
    key = jax.random.PRNGKey(0)
    k_ids, k_tok, k_pos, k_q, k_k, k_v, k_o = jax.random.split(key, 7)

    input_ids = jax.random.randint(k_ids, (B, S), 0, V, dtype=jnp.int32)
    attention_mask = jnp.ones((B, S), dtype=jnp.float32)
    attention_mask = attention_mask.at[1, S - 2:].set(0.0)    # pad tail of row 1

    params = {
        "embed_tokens":    0.02 * jax.random.normal(k_tok, (V, H), jnp.float32),
        "embed_positions": 0.02 * jax.random.normal(k_pos, (P, H), jnp.float32),
        "wq": 0.1 * jax.random.normal(k_q, (H, H), jnp.float32),
        "wk": 0.1 * jax.random.normal(k_k, (H, H), jnp.float32),
        "wv": 0.1 * jax.random.normal(k_v, (H, H), jnp.float32),
        "wo": 0.1 * jax.random.normal(k_o, (H, H), jnp.float32),
    }

    encoder_states, _, _ = bart_encoder_wrapper(input_ids, attention_mask, params)
    encoder_states = jax.block_until_ready(encoder_states)

    ref = _reference(input_ids, attention_mask, params)
    assert encoder_states.shape == (B, S, H)
    # Tolerance accounts for the EUP approximate reciprocal in the softmax.
    assert jnp.allclose(encoder_states, ref, atol=1e-3, rtol=1e-3), (
        float(jnp.max(jnp.abs(encoder_states - ref))))

    print("KERNEL_OK")
</pallas_src>

<mosaic_0001>
module attributes {stable_mosaic.version = 11 : i64} {
  func.func @_bart_encoder_kernel(%arg0: i32, %arg1: memref<16x1xi32, #tpu.memory_space<vmem>>, %arg2: memref<16x16xf32, #tpu.memory_space<vmem>>, %arg3: memref<64x128xf32, #tpu.memory_space<vmem>>, %arg4: memref<128x128xf32, #tpu.memory_space<vmem>>, %arg5: memref<32x128xf32, #tpu.memory_space<vmem>>, %arg6: memref<16x128xf32, #tpu.memory_space<vmem>>) attributes {dimension_semantics = [#tpu.dimension_semantics<arbitrary>], iteration_bounds = array<i64: 1>, scalar_prefetch = 0 : i64, scratch_operands = 0 : i64, tpu.core_type = #tpu.core_type<tc>, window_params = [{pipeline_mode = #tpu.pipeline_mode<synchronous>, transform_indices = @transform_0, window_bounds = array<i64: 16, 1>}, {pipeline_mode = #tpu.pipeline_mode<synchronous>, transform_indices = @transform_1, window_bounds = array<i64: 16, 16>}, {pipeline_mode = #tpu.pipeline_mode<synchronous>, transform_indices = @transform_2, window_bounds = array<i64: 64, 128>}, {pipeline_mode = #tpu.pipeline_mode<synchronous>, transform_indices = @transform_3, window_bounds = array<i64: 128, 128>}, {pipeline_mode = #tpu.pipeline_mode<synchronous>, transform_indices = @transform_4, window_bounds = array<i64: 32, 128>}, {pipeline_mode = #tpu.pipeline_mode<synchronous>, transform_indices = @transform_5, window_bounds = array<i64: 16, 128>}]} {
    %c0 = arith.constant 0 : index
    %c0_0 = arith.constant 0 : index
    %0 = vector.load %arg1[%c0, %c0_0] : memref<16x1xi32, #tpu.memory_space<vmem>>, vector<16x1xi32>
    %1 = tpu.iota {dimensions = array<i32: 1>} : vector<16x64xi32>
    %2 = vector.broadcast %0 : vector<16x1xi32> to vector<16x64xi32>
    %3 = arith.cmpi eq, %1, %2 : vector<16x64xi32>
    %4 = arith.extui %3 : vector<16x64xi1> to vector<16x64xi32>
    %5 = arith.sitofp %4 : vector<16x64xi32> to vector<16x64xf32>
    %c0_1 = arith.constant 0 : index
    %c0_2 = arith.constant 0 : index
    %6 = vector.load %arg3[%c0_1, %c0_2] : memref<64x128xf32, #tpu.memory_space<vmem>>, vector<64x128xf32>
    %cst = arith.constant dense<0.000000e+00> : vector<16x128xf32>
    %7 = tpu.matmul %5, %6, %cst {dimension_numbers = #tpu.dot_dimension_numbers<[1], [0], [0], [1], [0, 0, 1, 1], [], []>} : vector<16x64xf32>, vector<64x128xf32>, vector<16x128xf32> -> vector<16x128xf32>
    %c0_3 = arith.constant 0 : index
    %c0_4 = arith.constant 0 : index
    %8 = vector.load %arg4[%c0_3, %c0_4] : memref<128x128xf32, #tpu.memory_space<vmem>>, vector<128x128xf32>
    %cst_5 = arith.constant dense<0.000000e+00> : vector<16x128xf32>
    %9 = tpu.matmul %7, %8, %cst_5 {dimension_numbers = #tpu.dot_dimension_numbers<[1], [0], [0], [1], [0, 0, 1, 1], [], []>} : vector<16x128xf32>, vector<128x128xf32>, vector<16x128xf32> -> vector<16x128xf32>
    %10 = vector.extract_strided_slice %9 {offsets = [0, 0], sizes = [16, 32], strides = [1, 1]} : vector<16x128xf32> to vector<16x32xf32>
    %11 = vector.extract_strided_slice %9 {offsets = [0, 32], sizes = [16, 32], strides = [1, 1]} : vector<16x128xf32> to vector<16x32xf32>
    %12 = vector.extract_strided_slice %9 {offsets = [0, 64], sizes = [16, 32], strides = [1, 1]} : vector<16x128xf32> to vector<16x32xf32>
    %cst_6 = arith.constant dense<0.000000e+00> : vector<16x16xf32>
    %13 = tpu.matmul %10, %11, %cst_6 {dimension_numbers = #tpu.dot_dimension_numbers<[1], [1], [0], [0], [0, 0, 1, 0], [], []>} : vector<16x32xf32>, vector<16x32xf32>, vector<16x16xf32> -> vector<16x16xf32>
    %cst_7 = arith.constant 0.176776692 : f32
    %14 = vector.broadcast %cst_7 : f32 to vector<16x16xf32>
    %15 = arith.mulf %13, %14 : vector<16x16xf32>
    %c0_8 = arith.constant 0 : index
    %c0_9 = arith.constant 0 : index
    %16 = vector.load %arg2[%c0_8, %c0_9] : memref<16x16xf32, #tpu.memory_space<vmem>>, vector<16x16xf32>
    %17 = arith.addf %15, %16 : vector<16x16xf32>
    %cst_10 = arith.constant dense<0xFF800000> : vector<16xf32>
    %18 = vector.multi_reduction <maximumf>, %17, %cst_10 [1] : vector<16x16xf32> to vector<16xf32>
    %19 = vector.shape_cast %18 : vector<16xf32> to vector<16x1xf32>
    %20 = vector.broadcast %19 : vector<16x1xf32> to vector<16x16xf32>
    %21 = arith.subf %17, %20 : vector<16x16xf32>
    %22 = math.exp %21 : vector<16x16xf32>
    %cst_11 = arith.constant dense<0.000000e+00> : vector<16xf32>
    %23 = vector.multi_reduction <add>, %22, %cst_11 [1] : vector<16x16xf32> to vector<16xf32>
    %24 = vector.shape_cast %23 : vector<16xf32> to vector<16x1xf32>
    %25 = tpu.reciprocal %24 {approx = true} : vector<16x1xf32> -> vector<16x1xf32>
    %26 = vector.broadcast %25 : vector<16x1xf32> to vector<16x16xf32>
    %27 = arith.mulf %22, %26 : vector<16x16xf32>
    %cst_12 = arith.constant dense<0.000000e+00> : vector<16x32xf32>
    %28 = tpu.matmul %27, %12, %cst_12 {dimension_numbers = #tpu.dot_dimension_numbers<[1], [0], [0], [1], [0, 0, 1, 1], [], []>} : vector<16x16xf32>, vector<16x32xf32>, vector<16x32xf32> -> vector<16x32xf32>
    %c0_13 = arith.constant 0 : index
    %c0_14 = arith.constant 0 : index
    %29 = vector.load %arg5[%c0_13, %c0_14] : memref<32x128xf32, #tpu.memory_space<vmem>>, vector<32x128xf32>
    %cst_15 = arith.constant dense<0.000000e+00> : vector<16x128xf32>
    %30 = tpu.matmul %28, %29, %cst_15 {dimension_numbers = #tpu.dot_dimension_numbers<[1], [0], [0], [1], [0, 0, 1, 1], [], []>} : vector<16x32xf32>, vector<32x128xf32>, vector<16x128xf32> -> vector<16x128xf32>
    %31 = arith.addf %30, %7 : vector<16x128xf32>
    %c0_16 = arith.constant 0 : index
    %c0_17 = arith.constant 0 : index
    %32 = vector.load %arg6[%c0_16, %c0_17] : memref<16x128xf32, #tpu.memory_space<vmem>>, vector<16x128xf32>
    tpu.vector_store %arg6[%c0_16, %c0_17], %31 {strides = array<i32>} : memref<16x128xf32, #tpu.memory_space<vmem>>, vector<16x128xf32>,
    return
  }
  func.func @transform_0(%arg0: i32) -> (i32, i32) {
    %c0_i32 = arith.constant 0 : i32
    %c0_i32_0 = arith.constant 0 : i32
    %c0_i32_1 = arith.constant 0 : i32
    return %c0_i32, %c0_i32_0 : i32, i32
  }
  func.func @transform_1(%arg0: i32) -> (i32, i32) {
    %c0_i32 = arith.constant 0 : i32
    %c0_i32_0 = arith.constant 0 : i32
    %c0_i32_1 = arith.constant 0 : i32
    return %c0_i32, %c0_i32_0 : i32, i32
  }
  func.func @transform_2(%arg0: i32) -> (i32, i32) {
    %c0_i32 = arith.constant 0 : i32
    %c0_i32_0 = arith.constant 0 : i32
    %c0_i32_1 = arith.constant 0 : i32
    return %c0_i32, %c0_i32_0 : i32, i32
  }
  func.func @transform_3(%arg0: i32) -> (i32, i32) {
    %c0_i32 = arith.constant 0 : i32
    %c0_i32_0 = arith.constant 0 : i32
    %c0_i32_1 = arith.constant 0 : i32
    return %c0_i32, %c0_i32_0 : i32, i32
  }
  func.func @transform_4(%arg0: i32) -> (i32, i32) {
    %c0_i32 = arith.constant 0 : i32
    %c0_i32_0 = arith.constant 0 : i32
    %c0_i32_1 = arith.constant 0 : i32
    return %c0_i32, %c0_i32_0 : i32, i32
  }
  func.func @transform_5(%arg0: i32) -> (i32, i32) {
    %c0_i32 = arith.constant 0 : i32
    %c0_i32_0 = arith.constant 0 : i32
    %c0_i32_1 = arith.constant 0 : i32
    return %c0_i32, %c0_i32_0 : i32, i32
  }
}

</mosaic_0001>

<llo_original>
// kernel: tpu_custom_call.1
$region0: #{tpu_custom_call.1}
  #allocation0 [shape = 'u32[]', space=smem, size = 0x4, offset = 0x4, fixed_abs, tag = 'smem constant byte address 0x4 - core index']
  #allocation1 [shape = 'u32[72,128]{1,0:T(1,128)}', space=vmem, size = 0x9000, scoped, tag = 'internal scratch']
  %s0 = inlined_call_operand.vmem [shape: s32[16,1], index: 0, kind: input, shape index: {}]
  %s1 = inlined_call_operand.vmem [shape: f32[16,16], index: 1, kind: input, shape index: {}]
  %s2 = inlined_call_operand.hbm [shape: f32[64,128], index: 2, kind: input, shape index: {}]
  %s3 = inlined_call_operand.hbm [shape: f32[128,128], index: 3, kind: input, shape index: {}]
  %s4 = inlined_call_operand.hbm [shape: f32[32,128], index: 4, kind: input, shape index: {}]
  %s5 = inlined_call_operand.hbm [shape: f32[16,128], index: 5, kind: output, shape index: {}]
  %s6 = sld [smem:[#allocation0]]
  $region42: #{tpu_custom_call.1} parent=0
    _
  %s8 = ssub.s32 1, %s6
  %s9 = scalar_select 0, %s8, %s6
  $region1: #{tpu_custom_call.1} parent=0
    #allocation2 [shape = 'u8[32768]{0}', space=vmem, size = 0x8000, scoped, tag = 'input window, operand 2, single buffered']
    #allocation3 [shape = 's32[1]{0}', space=sflag, size = 0x4, scoped, tag = 'scoped memory for tpu_custom_call.1']
    #allocation4 [shape = 's32[1]{0}', space=sflag, size = 0x4, scoped, tag = 'scoped memory for tpu_custom_call.1']
    #allocation5 [shape = 'u8[65536]{0}', space=vmem, size = 0x10000, scoped, tag = 'input window, operand 3, single buffered']
    #allocation6 [shape = 's32[1]{0}', space=sflag, size = 0x4, scoped, tag = 'scoped memory for tpu_custom_call.1']
    #allocation7 [shape = 'u8[16384]{0}', space=vmem, size = 0x4000, scoped, tag = 'input window, operand 4, single buffered']
    #allocation8 [shape = 'u8[8192]{0}', space=vmem, size = 0x2000, scoped, tag = 'output window, operand 0, single buffered']
    %10 = vsyncpa [#allocation3], 0
    %11 = vsyncpa [#allocation6], 0
    %12 = vsyncpa [#allocation4], 0
    // Predicated region
    $region2: #{tpu_custom_call.1} parent=1 // pred_check
      _
    $region3: #{tpu_custom_call.1} parent=1 // pred_check_branch
      %14 = sbr.rel (0) target = $region5
    $region4: #{tpu_custom_call.1} parent=1 // pred_region
      _
    $region5: #{tpu_custom_call.1} parent=1 // pred_fallthru
      _
    // Predicated region
    $region6: #{tpu_custom_call.1} parent=1 // pred_check
      _
    $region7: #{tpu_custom_call.1} parent=1 // pred_check_branch
      %16 = sbr.rel (0) target = $region9
    $region8: #{tpu_custom_call.1} parent=1 // pred_region
      _
    $region9: #{tpu_custom_call.1} parent=1 // pred_fallthru
      _
    // Predicated region
    $region10: #{tpu_custom_call.1} parent=1 // pred_check
      _
    $region11: #{tpu_custom_call.1} parent=1 // pred_check_branch
      %18 = sbr.rel (0) target = $region13
    $region12: #{tpu_custom_call.1} parent=1 // pred_region
      %20 = vsyncadd [#allocation3], 0
      %s21 = sshll.u32 %s2, 4
      %s22 = int_to_ptr.hbm [resolvable:$true] %s21
      %s23 = sshll.u32 [#allocation2], 4
      %s24 = int_to_ptr.vmem [resolvable:$true] %s23
      %29 = dma.hbm_to_vmem [thread:$0]  %s22, 1024, %s24, [#allocation3], 128, 128, 8
    $region13: #{tpu_custom_call.1} parent=1 // pred_fallthru
      _
    // Predicated region
    $region14: #{tpu_custom_call.1} parent=1 // pred_check
      _
    $region15: #{tpu_custom_call.1} parent=1 // pred_check_branch
      %31 = sbr.rel (0) target = $region17
    $region16: #{tpu_custom_call.1} parent=1 // pred_region
      %33 = vsyncadd [#allocation6], 0
      %s34 = sshll.u32 %s3, 4
      %s35 = int_to_ptr.hbm [resolvable:$true] %s34
      %s36 = sshll.u32 [#allocation5], 4
      %s37 = int_to_ptr.vmem [resolvable:$true] %s36
      %42 = dma.hbm_to_vmem [thread:$0]  %s35, 2048, %s37, [#allocation6], 128, 128, 8
    $region17: #{tpu_custom_call.1} parent=1 // pred_fallthru
      _
    // Predicated region
    $region18: #{tpu_custom_call.1} parent=1 // pred_check
      _
    $region19: #{tpu_custom_call.1} parent=1 // pred_check_branch
      %44 = sbr.rel (0) target = $region21
    $region20: #{tpu_custom_call.1} parent=1 // pred_region
      %46 = vsyncadd [#allocation6], 0
      %s47 = sshll.u32 %s4, 4
      %s48 = int_to_ptr.hbm [resolvable:$true] %s47
      %s49 = sshll.u32 [#allocation7], 4
      %s50 = int_to_ptr.vmem [resolvable:$true] %s49
      %55 = dma.hbm_to_vmem [thread:$0]  %s48, 512, %s50, [#allocation6], 128, 128, 8
    $region21: #{tpu_custom_call.1} parent=1 // pred_fallthru
      _
    // Predicated region
    $region22: #{tpu_custom_call.1} parent=1 // pred_check
      _
    $region23: #{tpu_custom_call.1} parent=1 // pred_check_branch
      %57 = sbr.rel (0) target = $region25
    $region24: #{tpu_custom_call.1} parent=1 // pred_region
      %59 = dma.done [#allocation3], 1024
    $region25: #{tpu_custom_call.1} parent=1 // pred_fallthru
      _
    // Predicated region
    $region26: #{tpu_custom_call.1} parent=1 // pred_check
      _
    $region27: #{tpu_custom_call.1} parent=1 // pred_check_branch
      %61 = sbr.rel (0) target = $region29
    $region28: #{tpu_custom_call.1} parent=1 // pred_region
      %63 = dma.done [#allocation6], 2048
    $region29: #{tpu_custom_call.1} parent=1 // pred_fallthru
      _
    // Predicated region
    $region30: #{tpu_custom_call.1} parent=1 // pred_check
      _
    $region31: #{tpu_custom_call.1} parent=1 // pred_check_branch
      %65 = sbr.rel (0) target = $region33
    $region32: #{tpu_custom_call.1} parent=1 // pred_region
      %67 = dma.done [#allocation6], 512
    $region33: #{tpu_custom_call.1} parent=1 // pred_fallthru
      _
    %v68 = vld [vmem:[%s0] sm:$0xff]
    %v69 = vld [vmem:[%s0 + $0x8] sm:$0xff]
    %v70 = vlaneseq
    %v71 = vand.u32 %v70, 127
    %72 = vset.pattern.permute.xlu0 0
    %73 = vperm.xlu0 %72, %v68
    %v74 = vpop.permute.xlu0 %73
    %75 = vset.pattern.permute.xlu0 0
    %76 = vperm.xlu0 %75, %v69
    %v77 = vpop.permute.xlu0 %76
    %vm78 = vcmp.eq.s32.totalorder %v71, %v74
    %vm79 = vcmp.eq.s32.totalorder %v71, %v77
    %v80 = vsel %vm78, 1, 0
    %v81 = vsel %vm79, 1, 0
    %v82 = vcvt.s32.f32 %v80
    %v83 = vcvt.s32.f32 %v81
    %v84 = vld [vmem:[#allocation2] sm:$0xff]
    %v85 = vld [vmem:[#allocation2 + $0x8] sm:$0xff]
    %v86 = vld [vmem:[#allocation2 + $0x10] sm:$0xff]
    %v87 = vld [vmem:[#allocation2 + $0x18] sm:$0xff]
    %v88 = vld [vmem:[#allocation2 + $0x20] sm:$0xff]
    %v89 = vld [vmem:[#allocation2 + $0x28] sm:$0xff]
    %v90 = vld [vmem:[#allocation2 + $0x30] sm:$0xff]
    %v91 = vld [vmem:[#allocation2 + $0x38] sm:$0xff]
    %vm92 = vcmask 523264
    %v94 = vsel %vm92, %v82, 0
    %v97 = vsel %vm92, %v83, 0
    %99 = vmatpush.msra.mxu0 0.0
    %100 = vmatpush.msra.mxu0 0.0
    %101 = vmatpush.msra.mxu0 0.0
    %102 = vmatpush.msra.mxu0 0.0
    %103 = vmatpush.msra.mxu0 0.0
    %104 = vmatpush.msra.mxu0 0.0
    %105 = vmatpush.msra.mxu0 0.0
    %106 = vmatpush.msra.mxu0 0.0
    %107 = vmatpush.msra.mxu0 %v91
    %108 = vmatpush.msra.mxu0 %v90
    %109 = vmatpush.msra.mxu0 %v89
    %110 = vmatpush.msra.mxu0 %v88
    %111 = vmatpush.msra.mxu0 %v87
    %112 = vmatpush.msra.mxu0 %v86
    %113 = vmatpush.msra.mxu0 %v85
    %114 = vmatpush.msra.mxu0 %v84
    %115 = vmatmul.f32.gmra.mxu0 %v94
    %v116 = vpop.f32.mrf.mxu0
    %v117 = vadd.f32 0.0, %v116
    %118 = vmatmul.f32.gmra.mxu0 %v97
    %v119 = vpop.f32.mrf.mxu0
    %v120 = vadd.f32 0.0, %v119
    %121 = vdwg.mxu0
    %v122 = vld [vmem:[#allocation5] sm:$0xff]
    %v123 = vld [vmem:[#allocation5 + $0x8] sm:$0xff]
    %v124 = vld [vmem:[#allocation5 + $0x10] sm:$0xff]
    %v125 = vld [vmem:[#allocation5 + $0x18] sm:$0xff]
    %v126 = vld [vmem:[#allocation5 + $0x20] sm:$0xff]
    %v127 = vld [vmem:[#allocation5 + $0x28] sm:$0xff]
    %v128 = vld [vmem:[#allocation5 + $0x30] sm:$0xff]
    %v129 = vld [vmem:[#allocation5 + $0x38] sm:$0xff]
    %v130 = vld [vmem:[#allocation5 + $0x40] sm:$0xff]
    %v131 = vld [vmem:[#allocation5 + $0x48] sm:$0xff]
    %v132 = vld [vmem:[#allocation5 + $0x50] sm:$0xff]
    %v133 = vld [vmem:[#allocation5 + $0x58] sm:$0xff]
    %v134 = vld [vmem:[#allocation5 + $0x60] sm:$0xff]
    %v135 = vld [vmem:[#allocation5 + $0x68] sm:$0xff]
    %v136 = vld [vmem:[#allocation5 + $0x70] sm:$0xff]
    %v137 = vld [vmem:[#allocation5 + $0x78] sm:$0xff]
    %138 = vmatpush.msra.mxu0 %v137
    %139 = vmatpush.msra.mxu0 %v136
    %140 = vmatpush.msra.mxu0 %v135
    %141 = vmatpush.msra.mxu0 %v134
    %142 = vmatpush.msra.mxu0 %v133
    %143 = vmatpush.msra.mxu0 %v132
    %144 = vmatpush.msra.mxu0 %v131
    %145 = vmatpush.msra.mxu0 %v130
    %146 = vmatpush.msra.mxu0 %v129
    %147 = vmatpush.msra.mxu0 %v128
    %148 = vmatpush.msra.mxu0 %v127
    %149 = vmatpush.msra.mxu0 %v126
    %150 = vmatpush.msra.mxu0 %v125
    %151 = vmatpush.msra.mxu0 %v124
    %152 = vmatpush.msra.mxu0 %v123
    %153 = vmatpush.msra.mxu0 %v122
    %154 = vmatmul.f32.gmra.mxu0 %v117
    %v155 = vpop.f32.mrf.mxu0
    %v156 = vadd.f32 0.0, %v155
    %157 = vmatmul.f32.gmra.mxu0 %v120
    %v158 = vpop.f32.mrf.mxu0
    %v159 = vadd.f32 0.0, %v158
    %160 = vdwg.mxu0
    %163 = vrot.lane.b32.xlu0 %v156, 96
    %v164 = vpop.permute.xlu0 %163
    %165 = vrot.lane.b32.xlu0 %v159, 96
    %v166 = vpop.permute.xlu0 %165
    %vm167 = vcmask 261120
    %v168 = vsel %vm167, %v156, 0
    %v170 = vsel %vm167, %v159, 0
    %v172 = vsel %vm167, %v164, 0
    %v174 = vsel %vm167, %v166, 0
    %176 = vmatpush.xpose.msra.mxu0 0.0
    %177 = vmatpush.xpose.msra.mxu0 0.0
    %178 = vmatpush.xpose.msra.mxu0 0.0
    %179 = vmatpush.xpose.msra.mxu0 0.0
    %180 = vmatpush.xpose.msra.mxu0 0.0
    %181 = vmatpush.xpose.msra.mxu0 0.0
    %182 = vmatpush.xpose.msra.mxu0 0.0
    %183 = vmatpush.xpose.msra.mxu0 0.0
    %184 = vmatpush.xpose.msra.mxu0 0.0
    %185 = vmatpush.xpose.msra.mxu0 0.0
    %186 = vmatpush.xpose.msra.mxu0 0.0
    %187 = vmatpush.xpose.msra.mxu0 0.0
    %188 = vmatpush.xpose.msra.mxu0 0.0
    %189 = vmatpush.xpose.msra.mxu0 0.0
    %190 = vmatpush.xpose.msra.mxu0 %v174
    %191 = vmatpush.xpose.msra.mxu0 %v172
    %192 = vmatmul.f32.gmra.mxu0 %v168
    %v193 = vpop.f32.mrf.mxu0
    %v194 = vadd.f32 0.0, %v193
    %195 = vmatmul.f32.gmra.mxu0 %v170
    %v196 = vpop.f32.mrf.mxu0
    %v197 = vadd.f32 0.0, %v196
    %198 = vdwg.mxu0
    %v199 = vmul.f32 %v194, 0.17677669
    %v200 = vmul.f32 %v197, 0.17677669
    %v201 = vld [vmem:[%s1] sm:$0xff]
    %v202 = vld [vmem:[%s1 + $0x8] sm:$0xff]
    %v203 = vadd.f32 %v199, %v201
    %v204 = vadd.f32 %v200, %v202
    %vm205 = vcmask 130048
    %v206 = vsel %vm205, %v203, -inf
    %207 = vmax.xlane.f32.xlu0 %v206
    %v208 = vpop.xlane.xlu0 %207
    %v209 = vsel %vm205, %v204, -inf
    %210 = vmax.xlane.f32.xlu0 %v209
    %v211 = vpop.xlane.xlu0 %210
    %v212 = vsub.f32 %v203, %v208
    %v213 = vsub.f32 %v204, %v211
    %v214 = vmul.f32 %v212, 1.442695
    %v215 = vpow.pop %v214
    %v216 = vmul.f32 %v213, 1.442695
    %v217 = vpow.pop %v216
    %v218 = vsel %vm205, %v215, 0.0
    %219 = vadd.xlane.f32.xlu0 %v218
    %v220 = vpop.xlane.xlu0 %219
    %v221 = vsel %vm205, %v217, 0.0
    %222 = vadd.xlane.f32.xlu0 %v221
    %v223 = vpop.xlane.xlu0 %222
    %v224 = vrcp.pop %v220
    %v225 = vrcp.pop %v223
    %v226 = vmul.f32 %v215, %v224
    %v227 = vmul.f32 %v217, %v225
    %228 = vrot.lane.b32.xlu0 %v156, 64
    %v229 = vpop.permute.xlu0 %228
    %230 = vrot.lane.b32.xlu0 %v159, 64
    %v231 = vpop.permute.xlu0 %230
    %v235 = vsel %vm205, %v226, 0
    %v238 = vsel %vm205, %v227, 0
    %240 = vmatpush.msra.mxu0 0.0
    %241 = vmatpush.msra.mxu0 0.0
    %242 = vmatpush.msra.mxu0 0.0
    %243 = vmatpush.msra.mxu0 0.0
    %244 = vmatpush.msra.mxu0 0.0
    %245 = vmatpush.msra.mxu0 0.0
    %246 = vmatpush.msra.mxu0 0.0
    %247 = vmatpush.msra.mxu0 0.0
    %248 = vmatpush.msra.mxu0 0.0
    %249 = vmatpush.msra.mxu0 0.0
    %250 = vmatpush.msra.mxu0 0.0
    %251 = vmatpush.msra.mxu0 0.0
    %252 = vmatpush.msra.mxu0 0.0
    %253 = vmatpush.msra.mxu0 0.0
    %254 = vmatpush.msra.mxu0 %v231
    %255 = vmatpush.msra.mxu0 %v229
    %256 = vmatmul.f32.gmra.mxu0 %v235
    %v257 = vpop.f32.mrf.mxu0
    %v258 = vadd.f32 0.0, %v257
    %259 = vmatmul.f32.gmra.mxu0 %v238
    %v260 = vpop.f32.mrf.mxu0
    %v261 = vadd.f32 0.0, %v260
    %262 = vdwg.mxu0
    %v263 = vld [vmem:[#allocation7] sm:$0xff]
    %v264 = vld [vmem:[#allocation7 + $0x8] sm:$0xff]
    %v265 = vld [vmem:[#allocation7 + $0x10] sm:$0xff]
    %v266 = vld [vmem:[#allocation7 + $0x18] sm:$0xff]
    %v268 = vsel %vm167, %v258, 0
    %v271 = vsel %vm167, %v261, 0
    %273 = vmatpush.msra.mxu0 0.0
    %274 = vmatpush.msra.mxu0 0.0
    %275 = vmatpush.msra.mxu0 0.0
    %276 = vmatpush.msra.mxu0 0.0
    %277 = vmatpush.msra.mxu0 0.0
    %278 = vmatpush.msra.mxu0 0.0
    %279 = vmatpush.msra.mxu0 0.0
    %280 = vmatpush.msra.mxu0 0.0
    %281 = vmatpush.msra.mxu0 0.0
    %282 = vmatpush.msra.mxu0 0.0
    %283 = vmatpush.msra.mxu0 0.0
    %284 = vmatpush.msra.mxu0 0.0
    %285 = vmatpush.msra.mxu0 %v266
    %286 = vmatpush.msra.mxu0 %v265
    %287 = vmatpush.msra.mxu0 %v264
    %288 = vmatpush.msra.mxu0 %v263
    %289 = vmatmul.f32.gmra.mxu0 %v268
    %v290 = vpop.f32.mrf.mxu0
    %v291 = vadd.f32 %v117, %v290
    %292 = vmatmul.f32.gmra.mxu0 %v271
    %v293 = vpop.f32.mrf.mxu0
    %v294 = vadd.f32 %v120, %v293
    %295 = vdwg.mxu0
    %296 = vst [vmem:[#allocation8] sm:$0xff] %v291
    %297 = vst [vmem:[#allocation8 + $0x8] sm:$0xff] %v294
    // Predicated region
    $region34: #{tpu_custom_call.1} parent=1 // pred_check
      _
    $region35: #{tpu_custom_call.1} parent=1 // pred_check_branch
      %299 = sbr.rel (0) target = $region37
    $region36: #{tpu_custom_call.1} parent=1 // pred_region
      %301 = vsyncadd [#allocation4], 0
      %s302 = sshll.u32 [#allocation8], 4
      %s303 = int_to_ptr.vmem [resolvable:$true] %s302
      %s304 = sshll.u32 %s5, 4
      %s305 = int_to_ptr.hbm [resolvable:$true] %s304
      %310 = dma.vmem_to_hbm [thread:$0]  %s303, 256, %s305, [#allocation4], 128, 128, 8
    $region37: #{tpu_custom_call.1} parent=1 // pred_fallthru
      _
    // Predicated region
    $region38: #{tpu_custom_call.1} parent=1 // pred_check
      _
    $region39: #{tpu_custom_call.1} parent=1 // pred_check_branch
      %312 = sbr.rel (0) target = $region41
    $region40: #{tpu_custom_call.1} parent=1 // pred_region
      %314 = dma.done [#allocation4], 256
    $region41: #{tpu_custom_call.1} parent=1 // pred_fallthru
      _
    %315 = vsyncpa [#allocation3], 1
    %316 = vsyncpa [#allocation6], 1
    %317 = vsyncpa [#allocation4], 1

</llo_original>
